<compile_context>
chip_gen: v5e
topology: v5e:2x2
jax: 0.10.0
libtpu: 0.0.40
codegen_flags: <defaults>
</compile_context>

<pallas_src>
import functools

import jax
import jax.numpy as jnp
from jax.experimental import pallas as pl
from jax.experimental.pallas import tpu as pltpu

# ---- constants -------------------------------------------------------------
_EPS = 1e-8  # conversion.eps (assumed)

# PQ (SMPTE ST 2084) constants
_M1 = 2610.0 / 16384.0
_M2 = 2523.0 / 4096.0 * 128.0
_C1 = 3424.0 / 4096.0
_C2 = 2413.0 / 4096.0 * 32.0
_C3 = 2392.0 / 4096.0 * 32.0

_MAX_TILE_ROWS = 1024  # 1024 rows * 128 lanes * 3 ch * 4 B = 1.5 MiB / input block


def _pq_oetf_folded(y):
    """PQ inverse EOTF (y normalized so 1.0 == 10000 nits), divide folded into
    the log/exp chain.  Exact (no approx reciprocal): y=0 -> log=-inf -> ym=0."""
    y = jnp.clip(y, 0.0, 1.0)
    ym = jnp.exp(_M1 * jnp.log(y))  # == y ** _M1
    return jnp.exp(_M2 * (jnp.log(_C1 + _C2 * ym) - jnp.log(1.0 + _C3 * ym)))


def _pq_oetf_ref(y):
    """Direct formulation (power + divide) — used only by the pure-JAX reference."""
    y = jnp.clip(y, 0.0, 1.0)
    ym = jnp.power(y, _M1)
    return jnp.power((_C1 + _C2 * ym) / (1.0 + _C3 * ym), _M2)


def _rgb_to_itp(r, g, b, pq=_pq_oetf_folded):
    """BT.2020 linear RGB -> ITP. Element-wise on arrays of any shape."""
    inv4096 = 1.0 / 4096.0
    # RGB -> LMS (BT.2100); keep as VPU multiply-adds (K=3 matmul would waste the MXU).
    l = (1688.0 * r + 2146.0 * g + 262.0 * b) * inv4096
    m = (683.0 * r + 2951.0 * g + 462.0 * b) * inv4096
    s = (99.0 * r + 309.0 * g + 3688.0 * b) * inv4096
    # PQ non-linearity
    lp = pq(l)
    mp = pq(m)
    sp = pq(s)
    # LMS' -> ICtCp (BT.2100)
    i_ = 0.5 * lp + 0.5 * mp
    ct = (6610.0 * lp - 13613.0 * mp + 7003.0 * sp) * inv4096
    cp = (17933.0 * lp - 17390.0 * mp - 543.0 * sp) * inv4096
    # ICtCp -> ITP  (T = 0.5 * Ct)
    return i_, 0.5 * ct, cp


# ---- Pallas kernel ----------------------------------------------------------
def _delta_e_itp_kernel(pred_ref, target_ref, out_ref, *,
                        rows, cols, tile_rows, need_mask):
    """pred_ref/target_ref: (3, tile_rows, 128) VMEM blocks.
    out_ref: (8, 128) f32 — one independent partial sum per grid point
    (no cross-step accumulation -> all grid axes can be parallel)."""

    def itp(ref):
        return _rgb_to_itp(
            ref[0].astype(jnp.float32),
            ref[1].astype(jnp.float32),
            ref[2].astype(jnp.float32),
            pq=_pq_oetf_folded,
        )

    ip, tp_, pp = itp(pred_ref)
    it, tt, pt = itp(target_ref)

    # mse_map summed over channels, then sqrt(. + eps) -> per-pixel deltaE
    d2 = (ip - it) ** 2 + (tp_ - tt) ** 2 + (pp - pt) ** 2
    delta = jnp.sqrt(d2 + _EPS)

    if need_mask:
        # Zero out-of-bounds rows/lanes of partial edge blocks (OOB data in the
        # VMEM block is unspecified).  A few VPU ops, free under the EUP bound.
        i = pl.program_id(1)
        j = pl.program_id(2)
        r = jax.lax.broadcasted_iota(jnp.int32, (tile_rows, 128), 0) + i * tile_rows
        c = jax.lax.broadcasted_iota(jnp.int32, (tile_rows, 128), 1) + j * 128
        delta = jnp.where((r < rows) & (c < cols), delta, 0.0)

    # (tile_rows,128) -> (tile_rows//8, 8, 128) is layout-preserving; the sum
    # over axis 0 is plain vreg adds on the VPU (no XLU cross-lane reduce).
    out_ref[...] = jnp.sum(delta.reshape(tile_rows // 8, 8, 128), axis=0)


# ---- wrapper ----------------------------------------------------------------
def _round_up(x, m):
    return (x + m - 1) // m * m


@functools.partial(jax.jit, static_argnames=("loss_weight", "max_tile_rows"))
def delta_e_itp_loss(pred, target, *, loss_weight=1.0, max_tile_rows=_MAX_TILE_ROWS):
    """Equivalent of DeltaEITPLoss(mode='pixelwise')(pred, target). pred/target: (B,3,H,W).
    Feed bf16 inputs as bf16 (the kernel upcasts internally); do not pre-cast to f32."""
    B, C, H, W = pred.shape
    assert C == 3, "ITP conversion needs 3 channels"
    n_pix = H * W

    if n_pix % 128 == 0:
        # Zero-copy: collapse H*W and view pixels lane-dense as (rows, 128).
        rows, cols = n_pix // 128, 128
        pred_v = pred.reshape(B, 3, rows, 128)
        target_v = target.reshape(B, 3, rows, 128)
    else:
        # No pad, no copy: tile the raw (H, W) plane; kernel masks edge blocks.
        rows, cols = H, W
        pred_v, target_v = pred, target

    grid_r = pl.cdiv(rows, max_tile_rows)
    tile_rows = _round_up(pl.cdiv(rows, grid_r), 8)   # (8,128) block constraint
    grid_r = pl.cdiv(rows, tile_rows)
    grid_c = pl.cdiv(cols, 128)
    need_mask = (grid_r * tile_rows != rows) or (grid_c * 128 != cols)
    n_tiles = B * grid_r * grid_c

    kernel = functools.partial(
        _delta_e_itp_kernel,
        rows=rows, cols=cols, tile_rows=tile_rows, need_mask=need_mask,
    )

    in_block = (pl.Squeezed(), 3, tile_rows, 128)
    partials = pl.pallas_call(
        kernel,
        out_shape=jax.ShapeDtypeStruct((n_tiles, 8, 128), jnp.float32),
        grid_spec=pltpu.PrefetchScalarGridSpec(
            num_scalar_prefetch=0,
            grid=(B, grid_r, grid_c),
            in_specs=[
                pl.BlockSpec(in_block, lambda b, i, j: (b, 0, i, j)),
                pl.BlockSpec(in_block, lambda b, i, j: (b, 0, i, j)),
            ],
            out_specs=pl.BlockSpec(
                (pl.Squeezed(), 8, 128),
                lambda b, i, j: (b * (grid_r * grid_c) + i * grid_c + j, 0, 0),
            ),
        ),
        compiler_params=pltpu.CompilerParams(
            # All axes parallel: independent per-tile partials, so v7x's two
            # TensorCores can split row/col tiles even when B == 1.
            dimension_semantics=("parallel", "parallel", "parallel"),
            vmem_limit_bytes=32 * 1024 * 1024,
        ),
    )(pred_v, target_v)

    total = jnp.sum(partials)
    return loss_weight * (total / jnp.float32(B * n_pix))


# ---- pure-JAX references (sanity checks) -------------------------------------
def _reference_loss(pred, target, loss_weight=1.0, pq=_pq_oetf_ref):
    x = pred.astype(jnp.float32)
    y = target.astype(jnp.float32)

    def rgb2itp(v):  # v: (B,3,H,W)
        i_, t_, p_ = _rgb_to_itp(v[:, 0], v[:, 1], v[:, 2], pq=pq)
        return jnp.stack([i_, t_, p_], axis=1)

    p = rgb2itp(x)
    t = rgb2itp(y)
    mse_map = (p - t) ** 2
    delta = jnp.sqrt(jnp.sum(mse_map, axis=1) + _EPS)
    return loss_weight * jnp.mean(delta)


if __name__ == "__main__":
    key = jax.random.PRNGKey(0)
    k1, k2 = jax.random.split(key)

    # Case 1: 128-aligned pixel count (zero-copy flattened path).
    B, C, H, W = 2, 3, 16, 16
    pred = jax.random.uniform(k1, (B, C, H, W), dtype=jnp.float32)
    target = jax.random.uniform(k2, (B, C, H, W), dtype=jnp.float32)
    loss = jax.block_until_ready(delta_e_itp_loss(pred, target, loss_weight=1.0))
    # Same-math reference (folded PQ): validates grid / masking / reduction logic.
    ref_same = jax.block_until_ready(_reference_loss(pred, target, 1.0, pq=_pq_oetf_folded))
    assert jnp.allclose(loss, ref_same, rtol=1e-4, atol=1e-6), (loss, ref_same)
    # Original formulation (power + divide): validates the log/exp fold numerically.
    ref_dir = jax.block_until_ready(_reference_loss(pred, target, 1.0, pq=_pq_oetf_ref))
    assert jnp.allclose(loss, ref_dir, rtol=1e-3, atol=1e-5), (loss, ref_dir)

    # Case 2: non-128-aligned pixel count (no pad/copy; in-kernel edge masking).
    k3, k4 = jax.random.split(k2)
    pred2 = jax.random.uniform(k3, (1, 3, 17, 19), dtype=jnp.float32)
    target2 = jax.random.uniform(k4, (1, 3, 17, 19), dtype=jnp.float32)
    loss2 = jax.block_until_ready(delta_e_itp_loss(pred2, target2, loss_weight=1.0))
    ref2 = jax.block_until_ready(_reference_loss(pred2, target2, 1.0, pq=_pq_oetf_folded))
    assert jnp.allclose(loss2, ref2, rtol=1e-4, atol=1e-6), (loss2, ref2)

    # Case 3: multiple row tiles + row masking (small max_tile_rows to force it).
    k5, k6 = jax.random.split(k4)
    pred3 = jax.random.uniform(k5, (1, 3, 72, 32), dtype=jnp.float32)
    target3 = jax.random.uniform(k6, (1, 3, 72, 32), dtype=jnp.float32)
    loss3 = jax.block_until_ready(
        delta_e_itp_loss(pred3, target3, loss_weight=1.0, max_tile_rows=8))
    ref3 = jax.block_until_ready(_reference_loss(pred3, target3, 1.0, pq=_pq_oetf_folded))
    assert jnp.allclose(loss3, ref3, rtol=1e-4, atol=1e-6), (loss3, ref3)

    # Case 4: bf16 streaming path (upcast happens inside the kernel).
    pred_bf = pred.astype(jnp.bfloat16)
    target_bf = target.astype(jnp.bfloat16)
    loss4 = jax.block_until_ready(delta_e_itp_loss(pred_bf, target_bf, loss_weight=1.0))
    ref4 = jax.block_until_ready(_reference_loss(pred_bf, target_bf, 1.0, pq=_pq_oetf_folded))
    assert jnp.allclose(loss4, ref4, rtol=1e-4, atol=1e-6), (loss4, ref4)

    print("KERNEL_OK")
</pallas_src>

<mosaic_0001>
module attributes {stable_mosaic.version = 11 : i64} {
  func.func @_delta_e_itp_kernel(%arg0: i32, %arg1: i32, %arg2: i32, %arg3: memref<1x3x8x128xf32, #tpu.memory_space<vmem>>, %arg4: memref<1x3x8x128xf32, #tpu.memory_space<vmem>>, %arg5: memref<1x8x128xf32, #tpu.memory_space<vmem>>) attributes {dimension_semantics = [#tpu.dimension_semantics<parallel>, #tpu.dimension_semantics<parallel>, #tpu.dimension_semantics<parallel>], iteration_bounds = array<i64: 2, 1, 1>, scalar_prefetch = 0 : i64, scratch_operands = 0 : i64, tpu.core_type = #tpu.core_type<tc>, window_params = [{transform_indices = @transform_0, window_bounds = array<i64: 1, 3, 8, 128>}, {transform_indices = @transform_1, window_bounds = array<i64: 1, 3, 8, 128>}, {transform_indices = @transform_2, window_bounds = array<i64: 1, 8, 128>}]} {
    %c0 = arith.constant 0 : index
    %c0_0 = arith.constant 0 : index
    %c0_1 = arith.constant 0 : index
    %c0_2 = arith.constant 0 : index
    %0 = vector.load %arg3[%c0, %c0_0, %c0_1, %c0_2] : memref<1x3x8x128xf32, #tpu.memory_space<vmem>>, vector<1x1x8x128xf32>
    %1 = vector.shape_cast %0 : vector<1x1x8x128xf32> to vector<8x128xf32>
    %c0_3 = arith.constant 0 : index
    %c1 = arith.constant 1 : index
    %c0_4 = arith.constant 0 : index
    %c0_5 = arith.constant 0 : index
    %2 = vector.load %arg3[%c0_3, %c1, %c0_4, %c0_5] : memref<1x3x8x128xf32, #tpu.memory_space<vmem>>, vector<1x1x8x128xf32>
    %3 = vector.shape_cast %2 : vector<1x1x8x128xf32> to vector<8x128xf32>
    %c0_6 = arith.constant 0 : index
    %c2 = arith.constant 2 : index
    %c0_7 = arith.constant 0 : index
    %c0_8 = arith.constant 0 : index
    %4 = vector.load %arg3[%c0_6, %c2, %c0_7, %c0_8] : memref<1x3x8x128xf32, #tpu.memory_space<vmem>>, vector<1x1x8x128xf32>
    %5 = vector.shape_cast %4 : vector<1x1x8x128xf32> to vector<8x128xf32>
    %cst = arith.constant 1.688000e+03 : f32
    %6 = vector.broadcast %cst : f32 to vector<8x128xf32>
    %7 = arith.mulf %6, %1 : vector<8x128xf32>
    %cst_9 = arith.constant 2.146000e+03 : f32
    %8 = vector.broadcast %cst_9 : f32 to vector<8x128xf32>
    %9 = arith.mulf %8, %3 : vector<8x128xf32>
    %10 = arith.addf %7, %9 : vector<8x128xf32>
    %cst_10 = arith.constant 2.620000e+02 : f32
    %11 = vector.broadcast %cst_10 : f32 to vector<8x128xf32>
    %12 = arith.mulf %11, %5 : vector<8x128xf32>
    %13 = arith.addf %10, %12 : vector<8x128xf32>
    %cst_11 = arith.constant 2.44140625E-4 : f32
    %14 = vector.broadcast %cst_11 : f32 to vector<8x128xf32>
    %15 = arith.mulf %13, %14 : vector<8x128xf32>
    %cst_12 = arith.constant 6.830000e+02 : f32
    %16 = vector.broadcast %cst_12 : f32 to vector<8x128xf32>
    %17 = arith.mulf %16, %1 : vector<8x128xf32>
    %cst_13 = arith.constant 2.951000e+03 : f32
    %18 = vector.broadcast %cst_13 : f32 to vector<8x128xf32>
    %19 = arith.mulf %18, %3 : vector<8x128xf32>
    %20 = arith.addf %17, %19 : vector<8x128xf32>
    %cst_14 = arith.constant 4.620000e+02 : f32
    %21 = vector.broadcast %cst_14 : f32 to vector<8x128xf32>
    %22 = arith.mulf %21, %5 : vector<8x128xf32>
    %23 = arith.addf %20, %22 : vector<8x128xf32>
    %cst_15 = arith.constant 2.44140625E-4 : f32
    %24 = vector.broadcast %cst_15 : f32 to vector<8x128xf32>
    %25 = arith.mulf %23, %24 : vector<8x128xf32>
    %cst_16 = arith.constant 9.900000e+01 : f32
    %26 = vector.broadcast %cst_16 : f32 to vector<8x128xf32>
    %27 = arith.mulf %26, %1 : vector<8x128xf32>
    %cst_17 = arith.constant 3.090000e+02 : f32
    %28 = vector.broadcast %cst_17 : f32 to vector<8x128xf32>
    %29 = arith.mulf %28, %3 : vector<8x128xf32>
    %30 = arith.addf %27, %29 : vector<8x128xf32>
    %cst_18 = arith.constant 3.688000e+03 : f32
    %31 = vector.broadcast %cst_18 : f32 to vector<8x128xf32>
    %32 = arith.mulf %31, %5 : vector<8x128xf32>
    %33 = arith.addf %30, %32 : vector<8x128xf32>
    %cst_19 = arith.constant 2.44140625E-4 : f32
    %34 = vector.broadcast %cst_19 : f32 to vector<8x128xf32>
    %35 = arith.mulf %33, %34 : vector<8x128xf32>
    %cst_20 = arith.constant 0.000000e+00 : f32
    %cst_21 = arith.constant 1.000000e+00 : f32
    %36 = vector.broadcast %cst_20 : f32 to vector<8x128xf32>
    %37 = arith.maximumf %36, %15 : vector<8x128xf32>
    %38 = vector.broadcast %cst_21 : f32 to vector<8x128xf32>
    %39 = arith.minimumf %38, %37 : vector<8x128xf32>
    %40 = math.log %39 : vector<8x128xf32>
    %cst_22 = arith.constant 0.159301758 : f32
    %41 = vector.broadcast %cst_22 : f32 to vector<8x128xf32>
    %42 = arith.mulf %41, %40 : vector<8x128xf32>
    %43 = math.exp %42 : vector<8x128xf32>
    %cst_23 = arith.constant 18.8515625 : f32
    %44 = vector.broadcast %cst_23 : f32 to vector<8x128xf32>
    %45 = arith.mulf %44, %43 : vector<8x128xf32>
    %cst_24 = arith.constant 0.8359375 : f32
    %46 = vector.broadcast %cst_24 : f32 to vector<8x128xf32>
    %47 = arith.addf %46, %45 : vector<8x128xf32>
    %48 = math.log %47 : vector<8x128xf32>
    %cst_25 = arith.constant 1.868750e+01 : f32
    %49 = vector.broadcast %cst_25 : f32 to vector<8x128xf32>
    %50 = arith.mulf %49, %43 : vector<8x128xf32>
    %cst_26 = arith.constant 1.000000e+00 : f32
    %51 = vector.broadcast %cst_26 : f32 to vector<8x128xf32>
    %52 = arith.addf %51, %50 : vector<8x128xf32>
    %53 = math.log %52 : vector<8x128xf32>
    %54 = arith.subf %48, %53 : vector<8x128xf32>
    %cst_27 = arith.constant 78.84375 : f32
    %55 = vector.broadcast %cst_27 : f32 to vector<8x128xf32>
    %56 = arith.mulf %55, %54 : vector<8x128xf32>
    %57 = math.exp %56 : vector<8x128xf32>
    %cst_28 = arith.constant 0.000000e+00 : f32
    %cst_29 = arith.constant 1.000000e+00 : f32
    %58 = vector.broadcast %cst_28 : f32 to vector<8x128xf32>
    %59 = arith.maximumf %58, %25 : vector<8x128xf32>
    %60 = vector.broadcast %cst_29 : f32 to vector<8x128xf32>
    %61 = arith.minimumf %60, %59 : vector<8x128xf32>
    %62 = math.log %61 : vector<8x128xf32>
    %cst_30 = arith.constant 0.159301758 : f32
    %63 = vector.broadcast %cst_30 : f32 to vector<8x128xf32>
    %64 = arith.mulf %63, %62 : vector<8x128xf32>
    %65 = math.exp %64 : vector<8x128xf32>
    %cst_31 = arith.constant 18.8515625 : f32
    %66 = vector.broadcast %cst_31 : f32 to vector<8x128xf32>
    %67 = arith.mulf %66, %65 : vector<8x128xf32>
    %cst_32 = arith.constant 0.8359375 : f32
    %68 = vector.broadcast %cst_32 : f32 to vector<8x128xf32>
    %69 = arith.addf %68, %67 : vector<8x128xf32>
    %70 = math.log %69 : vector<8x128xf32>
    %cst_33 = arith.constant 1.868750e+01 : f32
    %71 = vector.broadcast %cst_33 : f32 to vector<8x128xf32>
    %72 = arith.mulf %71, %65 : vector<8x128xf32>
    %cst_34 = arith.constant 1.000000e+00 : f32
    %73 = vector.broadcast %cst_34 : f32 to vector<8x128xf32>
    %74 = arith.addf %73, %72 : vector<8x128xf32>
    %75 = math.log %74 : vector<8x128xf32>
    %76 = arith.subf %70, %75 : vector<8x128xf32>
    %cst_35 = arith.constant 78.84375 : f32
    %77 = vector.broadcast %cst_35 : f32 to vector<8x128xf32>
    %78 = arith.mulf %77, %76 : vector<8x128xf32>
    %79 = math.exp %78 : vector<8x128xf32>
    %cst_36 = arith.constant 0.000000e+00 : f32
    %cst_37 = arith.constant 1.000000e+00 : f32
    %80 = vector.broadcast %cst_36 : f32 to vector<8x128xf32>
    %81 = arith.maximumf %80, %35 : vector<8x128xf32>
    %82 = vector.broadcast %cst_37 : f32 to vector<8x128xf32>
    %83 = arith.minimumf %82, %81 : vector<8x128xf32>
    %84 = math.log %83 : vector<8x128xf32>
    %cst_38 = arith.constant 0.159301758 : f32
    %85 = vector.broadcast %cst_38 : f32 to vector<8x128xf32>
    %86 = arith.mulf %85, %84 : vector<8x128xf32>
    %87 = math.exp %86 : vector<8x128xf32>
    %cst_39 = arith.constant 18.8515625 : f32
    %88 = vector.broadcast %cst_39 : f32 to vector<8x128xf32>
    %89 = arith.mulf %88, %87 : vector<8x128xf32>
    %cst_40 = arith.constant 0.8359375 : f32
    %90 = vector.broadcast %cst_40 : f32 to vector<8x128xf32>
    %91 = arith.addf %90, %89 : vector<8x128xf32>
    %92 = math.log %91 : vector<8x128xf32>
    %cst_41 = arith.constant 1.868750e+01 : f32
    %93 = vector.broadcast %cst_41 : f32 to vector<8x128xf32>
    %94 = arith.mulf %93, %87 : vector<8x128xf32>
    %cst_42 = arith.constant 1.000000e+00 : f32
    %95 = vector.broadcast %cst_42 : f32 to vector<8x128xf32>
    %96 = arith.addf %95, %94 : vector<8x128xf32>
    %97 = math.log %96 : vector<8x128xf32>
    %98 = arith.subf %92, %97 : vector<8x128xf32>
    %cst_43 = arith.constant 78.84375 : f32
    %99 = vector.broadcast %cst_43 : f32 to vector<8x128xf32>
    %100 = arith.mulf %99, %98 : vector<8x128xf32>
    %101 = math.exp %100 : vector<8x128xf32>
    %cst_44 = arith.constant 5.000000e-01 : f32
    %102 = vector.broadcast %cst_44 : f32 to vector<8x128xf32>
    %103 = arith.mulf %102, %57 : vector<8x128xf32>
    %cst_45 = arith.constant 5.000000e-01 : f32
    %104 = vector.broadcast %cst_45 : f32 to vector<8x128xf32>
    %105 = arith.mulf %104, %79 : vector<8x128xf32>
    %106 = arith.addf %103, %105 : vector<8x128xf32>
    %cst_46 = arith.constant 6.610000e+03 : f32
    %107 = vector.broadcast %cst_46 : f32 to vector<8x128xf32>
    %108 = arith.mulf %107, %57 : vector<8x128xf32>
    %cst_47 = arith.constant 1.361300e+04 : f32
    %109 = vector.broadcast %cst_47 : f32 to vector<8x128xf32>
    %110 = arith.mulf %109, %79 : vector<8x128xf32>
    %111 = arith.subf %108, %110 : vector<8x128xf32>
    %cst_48 = arith.constant 7.003000e+03 : f32
    %112 = vector.broadcast %cst_48 : f32 to vector<8x128xf32>
    %113 = arith.mulf %112, %101 : vector<8x128xf32>
    %114 = arith.addf %111, %113 : vector<8x128xf32>
    %cst_49 = arith.constant 2.44140625E-4 : f32
    %115 = vector.broadcast %cst_49 : f32 to vector<8x128xf32>
    %116 = arith.mulf %114, %115 : vector<8x128xf32>
    %cst_50 = arith.constant 1.793300e+04 : f32
    %117 = vector.broadcast %cst_50 : f32 to vector<8x128xf32>
    %118 = arith.mulf %117, %57 : vector<8x128xf32>
    %cst_51 = arith.constant 1.739000e+04 : f32
    %119 = vector.broadcast %cst_51 : f32 to vector<8x128xf32>
    %120 = arith.mulf %119, %79 : vector<8x128xf32>
    %121 = arith.subf %118, %120 : vector<8x128xf32>
    %cst_52 = arith.constant 5.430000e+02 : f32
    %122 = vector.broadcast %cst_52 : f32 to vector<8x128xf32>
    %123 = arith.mulf %122, %101 : vector<8x128xf32>
    %124 = arith.subf %121, %123 : vector<8x128xf32>
    %cst_53 = arith.constant 2.44140625E-4 : f32
    %125 = vector.broadcast %cst_53 : f32 to vector<8x128xf32>
    %126 = arith.mulf %124, %125 : vector<8x128xf32>
    %cst_54 = arith.constant 5.000000e-01 : f32
    %127 = vector.broadcast %cst_54 : f32 to vector<8x128xf32>
    %128 = arith.mulf %127, %116 : vector<8x128xf32>
    %c0_55 = arith.constant 0 : index
    %c0_56 = arith.constant 0 : index
    %c0_57 = arith.constant 0 : index
    %c0_58 = arith.constant 0 : index
    %129 = vector.load %arg4[%c0_55, %c0_56, %c0_57, %c0_58] : memref<1x3x8x128xf32, #tpu.memory_space<vmem>>, vector<1x1x8x128xf32>
    %130 = vector.shape_cast %129 : vector<1x1x8x128xf32> to vector<8x128xf32>
    %c0_59 = arith.constant 0 : index
    %c1_60 = arith.constant 1 : index
    %c0_61 = arith.constant 0 : index
    %c0_62 = arith.constant 0 : index
    %131 = vector.load %arg4[%c0_59, %c1_60, %c0_61, %c0_62] : memref<1x3x8x128xf32, #tpu.memory_space<vmem>>, vector<1x1x8x128xf32>
    %132 = vector.shape_cast %131 : vector<1x1x8x128xf32> to vector<8x128xf32>
    %c0_63 = arith.constant 0 : index
    %c2_64 = arith.constant 2 : index
    %c0_65 = arith.constant 0 : index
    %c0_66 = arith.constant 0 : index
    %133 = vector.load %arg4[%c0_63, %c2_64, %c0_65, %c0_66] : memref<1x3x8x128xf32, #tpu.memory_space<vmem>>, vector<1x1x8x128xf32>
    %134 = vector.shape_cast %133 : vector<1x1x8x128xf32> to vector<8x128xf32>
    %cst_67 = arith.constant 1.688000e+03 : f32
    %135 = vector.broadcast %cst_67 : f32 to vector<8x128xf32>
    %136 = arith.mulf %135, %130 : vector<8x128xf32>
    %cst_68 = arith.constant 2.146000e+03 : f32
    %137 = vector.broadcast %cst_68 : f32 to vector<8x128xf32>
    %138 = arith.mulf %137, %132 : vector<8x128xf32>
    %139 = arith.addf %136, %138 : vector<8x128xf32>
    %cst_69 = arith.constant 2.620000e+02 : f32
    %140 = vector.broadcast %cst_69 : f32 to vector<8x128xf32>
    %141 = arith.mulf %140, %134 : vector<8x128xf32>
    %142 = arith.addf %139, %141 : vector<8x128xf32>
    %cst_70 = arith.constant 2.44140625E-4 : f32
    %143 = vector.broadcast %cst_70 : f32 to vector<8x128xf32>
    %144 = arith.mulf %142, %143 : vector<8x128xf32>
    %cst_71 = arith.constant 6.830000e+02 : f32
    %145 = vector.broadcast %cst_71 : f32 to vector<8x128xf32>
    %146 = arith.mulf %145, %130 : vector<8x128xf32>
    %cst_72 = arith.constant 2.951000e+03 : f32
    %147 = vector.broadcast %cst_72 : f32 to vector<8x128xf32>
    %148 = arith.mulf %147, %132 : vector<8x128xf32>
    %149 = arith.addf %146, %148 : vector<8x128xf32>
    %cst_73 = arith.constant 4.620000e+02 : f32
    %150 = vector.broadcast %cst_73 : f32 to vector<8x128xf32>
    %151 = arith.mulf %150, %134 : vector<8x128xf32>
    %152 = arith.addf %149, %151 : vector<8x128xf32>
    %cst_74 = arith.constant 2.44140625E-4 : f32
    %153 = vector.broadcast %cst_74 : f32 to vector<8x128xf32>
    %154 = arith.mulf %152, %153 : vector<8x128xf32>
    %cst_75 = arith.constant 9.900000e+01 : f32
    %155 = vector.broadcast %cst_75 : f32 to vector<8x128xf32>
    %156 = arith.mulf %155, %130 : vector<8x128xf32>
    %cst_76 = arith.constant 3.090000e+02 : f32
    %157 = vector.broadcast %cst_76 : f32 to vector<8x128xf32>
    %158 = arith.mulf %157, %132 : vector<8x128xf32>
    %159 = arith.addf %156, %158 : vector<8x128xf32>
    %cst_77 = arith.constant 3.688000e+03 : f32
    %160 = vector.broadcast %cst_77 : f32 to vector<8x128xf32>
    %161 = arith.mulf %160, %134 : vector<8x128xf32>
    %162 = arith.addf %159, %161 : vector<8x128xf32>
    %cst_78 = arith.constant 2.44140625E-4 : f32
    %163 = vector.broadcast %cst_78 : f32 to vector<8x128xf32>
    %164 = arith.mulf %162, %163 : vector<8x128xf32>
    %cst_79 = arith.constant 0.000000e+00 : f32
    %cst_80 = arith.constant 1.000000e+00 : f32
    %165 = vector.broadcast %cst_79 : f32 to vector<8x128xf32>
    %166 = arith.maximumf %165, %144 : vector<8x128xf32>
    %167 = vector.broadcast %cst_80 : f32 to vector<8x128xf32>
    %168 = arith.minimumf %167, %166 : vector<8x128xf32>
    %169 = math.log %168 : vector<8x128xf32>
    %cst_81 = arith.constant 0.159301758 : f32
    %170 = vector.broadcast %cst_81 : f32 to vector<8x128xf32>
    %171 = arith.mulf %170, %169 : vector<8x128xf32>
    %172 = math.exp %171 : vector<8x128xf32>
    %cst_82 = arith.constant 18.8515625 : f32
    %173 = vector.broadcast %cst_82 : f32 to vector<8x128xf32>
    %174 = arith.mulf %173, %172 : vector<8x128xf32>
    %cst_83 = arith.constant 0.8359375 : f32
    %175 = vector.broadcast %cst_83 : f32 to vector<8x128xf32>
    %176 = arith.addf %175, %174 : vector<8x128xf32>
    %177 = math.log %176 : vector<8x128xf32>
    %cst_84 = arith.constant 1.868750e+01 : f32
    %178 = vector.broadcast %cst_84 : f32 to vector<8x128xf32>
    %179 = arith.mulf %178, %172 : vector<8x128xf32>
    %cst_85 = arith.constant 1.000000e+00 : f32
    %180 = vector.broadcast %cst_85 : f32 to vector<8x128xf32>
    %181 = arith.addf %180, %179 : vector<8x128xf32>
    %182 = math.log %181 : vector<8x128xf32>
    %183 = arith.subf %177, %182 : vector<8x128xf32>
    %cst_86 = arith.constant 78.84375 : f32
    %184 = vector.broadcast %cst_86 : f32 to vector<8x128xf32>
    %185 = arith.mulf %184, %183 : vector<8x128xf32>
    %186 = math.exp %185 : vector<8x128xf32>
    %cst_87 = arith.constant 0.000000e+00 : f32
    %cst_88 = arith.constant 1.000000e+00 : f32
    %187 = vector.broadcast %cst_87 : f32 to vector<8x128xf32>
    %188 = arith.maximumf %187, %154 : vector<8x128xf32>
    %189 = vector.broadcast %cst_88 : f32 to vector<8x128xf32>
    %190 = arith.minimumf %189, %188 : vector<8x128xf32>
    %191 = math.log %190 : vector<8x128xf32>
    %cst_89 = arith.constant 0.159301758 : f32
    %192 = vector.broadcast %cst_89 : f32 to vector<8x128xf32>
    %193 = arith.mulf %192, %191 : vector<8x128xf32>
    %194 = math.exp %193 : vector<8x128xf32>
    %cst_90 = arith.constant 18.8515625 : f32
    %195 = vector.broadcast %cst_90 : f32 to vector<8x128xf32>
    %196 = arith.mulf %195, %194 : vector<8x128xf32>
    %cst_91 = arith.constant 0.8359375 : f32
    %197 = vector.broadcast %cst_91 : f32 to vector<8x128xf32>
    %198 = arith.addf %197, %196 : vector<8x128xf32>
    %199 = math.log %198 : vector<8x128xf32>
    %cst_92 = arith.constant 1.868750e+01 : f32
    %200 = vector.broadcast %cst_92 : f32 to vector<8x128xf32>
    %201 = arith.mulf %200, %194 : vector<8x128xf32>
    %cst_93 = arith.constant 1.000000e+00 : f32
    %202 = vector.broadcast %cst_93 : f32 to vector<8x128xf32>
    %203 = arith.addf %202, %201 : vector<8x128xf32>
    %204 = math.log %203 : vector<8x128xf32>
    %205 = arith.subf %199, %204 : vector<8x128xf32>
    %cst_94 = arith.constant 78.84375 : f32
    %206 = vector.broadcast %cst_94 : f32 to vector<8x128xf32>
    %207 = arith.mulf %206, %205 : vector<8x128xf32>
    %208 = math.exp %207 : vector<8x128xf32>
    %cst_95 = arith.constant 0.000000e+00 : f32
    %cst_96 = arith.constant 1.000000e+00 : f32
    %209 = vector.broadcast %cst_95 : f32 to vector<8x128xf32>
    %210 = arith.maximumf %209, %164 : vector<8x128xf32>
    %211 = vector.broadcast %cst_96 : f32 to vector<8x128xf32>
    %212 = arith.minimumf %211, %210 : vector<8x128xf32>
    %213 = math.log %212 : vector<8x128xf32>
    %cst_97 = arith.constant 0.159301758 : f32
    %214 = vector.broadcast %cst_97 : f32 to vector<8x128xf32>
    %215 = arith.mulf %214, %213 : vector<8x128xf32>
    %216 = math.exp %215 : vector<8x128xf32>
    %cst_98 = arith.constant 18.8515625 : f32
    %217 = vector.broadcast %cst_98 : f32 to vector<8x128xf32>
    %218 = arith.mulf %217, %216 : vector<8x128xf32>
    %cst_99 = arith.constant 0.8359375 : f32
    %219 = vector.broadcast %cst_99 : f32 to vector<8x128xf32>
    %220 = arith.addf %219, %218 : vector<8x128xf32>
    %221 = math.log %220 : vector<8x128xf32>
    %cst_100 = arith.constant 1.868750e+01 : f32
    %222 = vector.broadcast %cst_100 : f32 to vector<8x128xf32>
    %223 = arith.mulf %222, %216 : vector<8x128xf32>
    %cst_101 = arith.constant 1.000000e+00 : f32
    %224 = vector.broadcast %cst_101 : f32 to vector<8x128xf32>
    %225 = arith.addf %224, %223 : vector<8x128xf32>
    %226 = math.log %225 : vector<8x128xf32>
    %227 = arith.subf %221, %226 : vector<8x128xf32>
    %cst_102 = arith.constant 78.84375 : f32
    %228 = vector.broadcast %cst_102 : f32 to vector<8x128xf32>
    %229 = arith.mulf %228, %227 : vector<8x128xf32>
    %230 = math.exp %229 : vector<8x128xf32>
    %cst_103 = arith.constant 5.000000e-01 : f32
    %231 = vector.broadcast %cst_103 : f32 to vector<8x128xf32>
    %232 = arith.mulf %231, %186 : vector<8x128xf32>
    %cst_104 = arith.constant 5.000000e-01 : f32
    %233 = vector.broadcast %cst_104 : f32 to vector<8x128xf32>
    %234 = arith.mulf %233, %208 : vector<8x128xf32>
    %235 = arith.addf %232, %234 : vector<8x128xf32>
    %cst_105 = arith.constant 6.610000e+03 : f32
    %236 = vector.broadcast %cst_105 : f32 to vector<8x128xf32>
    %237 = arith.mulf %236, %186 : vector<8x128xf32>
    %cst_106 = arith.constant 1.361300e+04 : f32
    %238 = vector.broadcast %cst_106 : f32 to vector<8x128xf32>
    %239 = arith.mulf %238, %208 : vector<8x128xf32>
    %240 = arith.subf %237, %239 : vector<8x128xf32>
    %cst_107 = arith.constant 7.003000e+03 : f32
    %241 = vector.broadcast %cst_107 : f32 to vector<8x128xf32>
    %242 = arith.mulf %241, %230 : vector<8x128xf32>
    %243 = arith.addf %240, %242 : vector<8x128xf32>
    %cst_108 = arith.constant 2.44140625E-4 : f32
    %244 = vector.broadcast %cst_108 : f32 to vector<8x128xf32>
    %245 = arith.mulf %243, %244 : vector<8x128xf32>
    %cst_109 = arith.constant 1.793300e+04 : f32
    %246 = vector.broadcast %cst_109 : f32 to vector<8x128xf32>
    %247 = arith.mulf %246, %186 : vector<8x128xf32>
    %cst_110 = arith.constant 1.739000e+04 : f32
    %248 = vector.broadcast %cst_110 : f32 to vector<8x128xf32>
    %249 = arith.mulf %248, %208 : vector<8x128xf32>
    %250 = arith.subf %247, %249 : vector<8x128xf32>
    %cst_111 = arith.constant 5.430000e+02 : f32
    %251 = vector.broadcast %cst_111 : f32 to vector<8x128xf32>
    %252 = arith.mulf %251, %230 : vector<8x128xf32>
    %253 = arith.subf %250, %252 : vector<8x128xf32>
    %cst_112 = arith.constant 2.44140625E-4 : f32
    %254 = vector.broadcast %cst_112 : f32 to vector<8x128xf32>
    %255 = arith.mulf %253, %254 : vector<8x128xf32>
    %cst_113 = arith.constant 5.000000e-01 : f32
    %256 = vector.broadcast %cst_113 : f32 to vector<8x128xf32>
    %257 = arith.mulf %256, %245 : vector<8x128xf32>
    %258 = arith.subf %106, %235 : vector<8x128xf32>
    %259 = arith.mulf %258, %258 : vector<8x128xf32>
    %260 = arith.subf %128, %257 : vector<8x128xf32>
    %261 = arith.mulf %260, %260 : vector<8x128xf32>
    %262 = arith.addf %259, %261 : vector<8x128xf32>
    %263 = arith.subf %126, %255 : vector<8x128xf32>
    %264 = arith.mulf %263, %263 : vector<8x128xf32>
    %265 = arith.addf %262, %264 : vector<8x128xf32>
    %cst_114 = arith.constant 9.99999993E-9 : f32
    %266 = vector.broadcast %cst_114 : f32 to vector<8x128xf32>
    %267 = arith.addf %265, %266 : vector<8x128xf32>
    %268 = math.sqrt %267 : vector<8x128xf32>
    %269 = tpu.iota {dimensions = array<i32: 0>} : vector<8x128xi32>
    %c8_i32 = arith.constant 8 : i32
    %270 = arith.muli %arg1, %c8_i32 : i32
    %271 = vector.broadcast %270 : i32 to vector<8x128xi32>
    %272 = arith.addi %269, %271 : vector<8x128xi32>
    %273 = tpu.iota {dimensions = array<i32: 1>} : vector<8x128xi32>
    %c128_i32 = arith.constant 128 : i32
    %274 = arith.muli %arg2, %c128_i32 : i32
    %275 = vector.broadcast %274 : i32 to vector<8x128xi32>
    %276 = arith.addi %273, %275 : vector<8x128xi32>
    %c2_i32 = arith.constant 2 : i32
    %277 = vector.broadcast %c2_i32 : i32 to vector<8x128xi32>
    %278 = arith.cmpi slt, %272, %277 : vector<8x128xi32>
    %c128_i32_115 = arith.constant 128 : i32
    %279 = vector.broadcast %c128_i32_115 : i32 to vector<8x128xi32>
    %280 = arith.cmpi slt, %276, %279 : vector<8x128xi32>
    %281 = arith.andi %278, %280 : vector<8x128xi1>
    %cst_116 = arith.constant 0.000000e+00 : f32
    %282 = vector.broadcast %cst_116 : f32 to vector<8x128xf32>
    %283 = arith.select %281, %268, %282 : vector<8x128xi1>, vector<8x128xf32>
    %284 = vector.shape_cast %283 : vector<8x128xf32> to vector<1x8x128xf32>
    %cst_117 = arith.constant dense<0.000000e+00> : vector<8x128xf32>
    %285 = vector.multi_reduction <add>, %284, %cst_117 [0] : vector<1x8x128xf32> to vector<8x128xf32>
    %c0_118 = arith.constant 0 : index
    %c0_119 = arith.constant 0 : index
    %c0_120 = arith.constant 0 : index
    %286 = vector.load %arg5[%c0_118, %c0_119, %c0_120] : memref<1x8x128xf32, #tpu.memory_space<vmem>>, vector<1x8x128xf32>
    %287 = vector.shape_cast %286 : vector<1x8x128xf32> to vector<8x128xf32>
    %288 = vector.shape_cast %285 : vector<8x128xf32> to vector<1x8x128xf32>
    tpu.vector_store %arg5[%c0_118, %c0_119, %c0_120], %288 {strides = array<i32>} : memref<1x8x128xf32, #tpu.memory_space<vmem>>, vector<1x8x128xf32>,
    return
  }
  func.func @transform_0(%arg0: i32, %arg1: i32, %arg2: i32) -> (i32, i32, i32, i32) {
    %c0_i32 = arith.constant 0 : i32
    %c0_i32_0 = arith.constant 0 : i32
    return %arg0, %c0_i32, %arg1, %arg2 : i32, i32, i32, i32
  }
  func.func @transform_1(%arg0: i32, %arg1: i32, %arg2: i32) -> (i32, i32, i32, i32) {
    %c0_i32 = arith.constant 0 : i32
    %c0_i32_0 = arith.constant 0 : i32
    return %arg0, %c0_i32, %arg1, %arg2 : i32, i32, i32, i32
  }
  func.func @transform_2(%arg0: i32, %arg1: i32, %arg2: i32) -> (i32, i32, i32) {
    %c1_i32 = arith.constant 1 : i32
    %0 = arith.muli %arg0, %c1_i32 : i32
    %c1_i32_0 = arith.constant 1 : i32
    %1 = arith.muli %arg1, %c1_i32_0 : i32
    %2 = arith.addi %0, %1 : i32
    %3 = arith.addi %2, %arg2 : i32
    %c0_i32 = arith.constant 0 : i32
    %c0_i32_1 = arith.constant 0 : i32
    %c0_i32_2 = arith.constant 0 : i32
    return %3, %c0_i32, %c0_i32_1 : i32, i32, i32
  }
}

</mosaic_0001>

<llo_original>
// kernel: delta_e_itp_loss.1
$region0: #{delta_e_itp_loss.1}
  #allocation0 [shape = 'u32[]', space=smem, size = 0x4, offset = 0x4, fixed_abs, tag = 'smem constant byte address 0x4 - core index']
  #allocation1 [shape = 'u32[72,128]{1,0:T(1,128)}', space=vmem, size = 0x9000, scoped, tag = 'internal scratch']
  %s0 = inlined_call_operand.vmem [shape: f32[2,3,2,128], index: 0, kind: input, shape index: {}]
  %s1 = inlined_call_operand.vmem [shape: f32[2,3,2,128], index: 1, kind: input, shape index: {}]
  %s2 = inlined_call_operand.vmem [shape: f32[2,8,128], index: 2, kind: output, shape index: {}]
  %s3 = sld [smem:[#allocation0]]
  $region109: #{delta_e_itp_loss.1} parent=0
    _
  %s5 = ssub.s32 1, %s3
  %s6 = scalar_select 0, %s5, %s3
  $region1: #{delta_e_itp_loss.1} parent=0
    #allocation2 [shape = 'u8[24576]{0}', space=vmem, size = 0x6000, scoped, tag = 'input window, operand 0']
    #allocation3 [shape = 'u8[24576]{0}', space=vmem, size = 0x6000, scoped, tag = 'input window, operand 1']
    loop: start=0, step=1, limit=4
    $region2: #{delta_e_itp_loss.1} parent=1 // loop_pre_header
      _
    $region3: #{delta_e_itp_loss.1} parent=1 // loop_header
      %s8 = sphi 0, %s12
      %p9 = scmp.ge.s32.totalorder %s8, 4
      %s15 = sphi 0, %s34
      %s16 = sphi 0, %s30
      %s17 = sphi 0, %s26
      %s18 = sphi 0, %s15
      %s19 = sphi 0, %s16
      %s20 = sphi 0, %s17
      %s21 = sphi 0, %s18
      %s22 = sphi 0, %s19
      %s23 = sphi 0, %s20
      %s41 = sphi 0, %s43
      %s44 = sphi 0, %s41
      %s45 = sphi 0, %s44
      %s61 = sphi 0, %s45
      %s71 = sphi 0, %s73
      %s74 = sphi 0, %s71
      %s75 = sphi 0, %s74
      %s91 = sphi 0, %s75
      %s101 = sphi 0, %s103
      %s104 = sphi 0, %s101
      %s105 = sphi 0, %s104
      %s121 = sphi 0, %s105
    $region4: #{delta_e_itp_loss.1} parent=1 // loop_header_branch
      %11 = sbr.rel (%p9) target = $region8
    $region5: #{delta_e_itp_loss.1} parent=1 // loop_body
      %s13 = ssub.s32 %s8, 1
      %s14 = ssub.s32 %s8, 2
      %s24 = sadd.s32 1, %s17
      %p25 = scmp.ge.s32.totalorder %s24, 1
      %s26 = scalar_select %p25, 0, %s24
      %s27 = sadd.s32 1, %s16
      %s28 = scalar_select %p25, %s27, %s16
      %p29 = scmp.ge.s32.totalorder %s28, 1
      %s30 = scalar_select %p29, 0, %s28
      %s31 = sadd.s32 1, %s15
      %s32 = scalar_select %p29, %s31, %s15
      %p33 = scmp.ge.s32.totalorder %s32, 2
      %s34 = scalar_select %p33, 0, %s32
      %s35 = ssub.s32 %s15, %s34
      %s36 = ssub.s32 %s16, %s30
      %s37 = sor.u32 %s35, %s36
      %s38 = ssub.s32 %s17, %s26
      %s39 = sor.u32 %s37, %s38
      %p40 = scmp.eq.s32.totalorder %s39, 0
      %s42 = sadd.s32 %s41, 1
      %s43 = scalar_select %p40, %s41, %s42
      %p46 = pneg %p40
      %p47 = scmp.eq.s32.totalorder %s8, 1
      %p48 = por %p46, %p47
      %p49 = scmp.ne.s32.totalorder %s41, %s44
      %p50 = scmp.eq.s32.totalorder %s8, 0
      %p51 = por %p49, %p50
      %p52 = scmp.ne.s32.totalorder %s41, %s44
      %p53 = scmp.eq.s32.totalorder %s13, 1
      %p54 = por %p52, %p53
      %p55 = scmp.ne.s32.totalorder %s44, %s45
      %p56 = scmp.eq.s32.totalorder %s13, 0
      %p57 = por %p55, %p56
      %p58 = scmp.ne.s32.totalorder %s44, %s45
      %p59 = scmp.eq.s32.totalorder %s14, 1
      %p60 = por %p58, %p59
      %p62 = scmp.ne.s32.totalorder %s45, %s61
      %p63 = scmp.eq.s32.totalorder %s14, 0
      %p64 = por %p62, %p63
      %s65 = ssub.s32 %s15, %s34
      %s66 = ssub.s32 %s16, %s30
      %s67 = sor.u32 %s65, %s66
      %s68 = ssub.s32 %s17, %s26
      %s69 = sor.u32 %s67, %s68
      %p70 = scmp.eq.s32.totalorder %s69, 0
      %s72 = sadd.s32 %s71, 1
      %s73 = scalar_select %p70, %s71, %s72
      %p76 = pneg %p70
      %p77 = scmp.eq.s32.totalorder %s8, 1
      %p78 = por %p76, %p77
      %p79 = scmp.ne.s32.totalorder %s71, %s74
      %p80 = scmp.eq.s32.totalorder %s8, 0
      %p81 = por %p79, %p80
      %p82 = scmp.ne.s32.totalorder %s71, %s74
      %p83 = scmp.eq.s32.totalorder %s13, 1
      %p84 = por %p82, %p83
      %p85 = scmp.ne.s32.totalorder %s74, %s75
      %p86 = scmp.eq.s32.totalorder %s13, 0
      %p87 = por %p85, %p86
      %p88 = scmp.ne.s32.totalorder %s74, %s75
      %p89 = scmp.eq.s32.totalorder %s14, 1
      %p90 = por %p88, %p89
      %p92 = scmp.ne.s32.totalorder %s75, %s91
      %p93 = scmp.eq.s32.totalorder %s14, 0
      %p94 = por %p92, %p93
      %s95 = sadd.s32 %s15, %s16
      %s96 = sadd.s32 %s95, %s17
      %s97 = sadd.s32 %s34, %s30
      %s98 = sadd.s32 %s97, %s26
      %s99 = ssub.s32 %s96, %s98
      %p100 = scmp.eq.s32.totalorder %s99, 0
      %s102 = sadd.s32 %s101, 1
      %s103 = scalar_select %p100, %s101, %s102
      %p106 = pneg %p100
      %p107 = scmp.eq.s32.totalorder %s8, 1
      %p108 = por %p106, %p107
      %p109 = scmp.ne.s32.totalorder %s101, %s104
      %p110 = scmp.eq.s32.totalorder %s8, 0
      %p111 = por %p109, %p110
      %p112 = scmp.ne.s32.totalorder %s101, %s104
      %p113 = scmp.eq.s32.totalorder %s13, 1
      %p114 = por %p112, %p113
      %p115 = scmp.ne.s32.totalorder %s104, %s105
      %p116 = scmp.eq.s32.totalorder %s13, 0
      %p117 = por %p115, %p116
      %p118 = scmp.ne.s32.totalorder %s104, %s105
      %p119 = scmp.eq.s32.totalorder %s14, 1
      %p120 = por %p118, %p119
      %p122 = scmp.ne.s32.totalorder %s105, %s121
      %p123 = scmp.eq.s32.totalorder %s14, 0
      %p124 = por %p122, %p123
      %p125 = scmp.le.s32.totalorder 1, %s8
      %p126 = scmp.lt.s32.totalorder %s8, 3
      %p127 = pnand %p125, %p126
      %p128 = pneg %p127
      // Predicated region
      $region9: #{delta_e_itp_loss.1} parent=5 // pred_check
        _
      $region10: #{delta_e_itp_loss.1} parent=5 // pred_check_branch
        %130 = sbr.rel (%p127) target = $region12
      $region11: #{delta_e_itp_loss.1} parent=5 // pred_region
        %s131 = ssub.s32 %s8, 1
      $region12: #{delta_e_itp_loss.1} parent=5 // pred_fallthru
        _
      %p132 = scmp.lt.s32.totalorder %s8, 2
      // Predicated region
      $region13: #{delta_e_itp_loss.1} parent=5 // pred_check
        %p133 = pneg %p132
      $region14: #{delta_e_itp_loss.1} parent=5 // pred_check_branch
        %135 = sbr.rel (%p133) target = $region16
      $region15: #{delta_e_itp_loss.1} parent=5 // pred_region
        // Predicated region
        $region17: #{delta_e_itp_loss.1} parent=15 // pred_check
          %p136 = pneg %p51
        $region18: #{delta_e_itp_loss.1} parent=15 // pred_check_branch
          %138 = sbr.rel (%p136) target = $region20
        $region19: #{delta_e_itp_loss.1} parent=15 // pred_region
          %s139 = sand.u32 %s41, 1
          %s140 = sand.u32 %s41, 1
          %s141 = smul.addr %s140, 24
          %s142 = scalar_lea.vmem [#allocation2], %s141
          %s143 = smul.u32 4, %s16
          %s144 = ssub.s32 1, %s143
          %s145 = smul.u32 6, %s144
          %p146 = scmp.ne.s32.totalorder 0, %s145
          %s147 = sadd.s32 %s17, %s143
          %s148 = smul.addr %s15, 3
          %s149 = sadd.s32 %s147, %s148
          %s150 = smul.addr %s149, 2
          %s151 = scalar_lea.vmem %s0, %s150
          // Predicated region
          $region21: #{delta_e_itp_loss.1} parent=19 // pred_check
            %p152 = pneg %p146
          $region22: #{delta_e_itp_loss.1} parent=19 // pred_check_branch
            %154 = sbr.rel (%p152) target = $region24
          $region23: #{delta_e_itp_loss.1} parent=19 // pred_region
            // Predicated region
            $region25: #{delta_e_itp_loss.1} parent=23 // pred_check
              _
            $region26: #{delta_e_itp_loss.1} parent=23 // pred_check_branch
              %156 = sbr.rel target = $region28
            $region27: #{delta_e_itp_loss.1} parent=23 // pred_region
              // Predicated region
              $region40: #{delta_e_itp_loss.1} parent=27 // pred_check
                _
              $region41: #{delta_e_itp_loss.1} parent=27 // pred_check_branch
                %184 = sbr.rel (0) target = $region43
              $region42: #{delta_e_itp_loss.1} parent=27 // pred_region
                %s186 = ssub.s32 4, 1
                // While loop
                $region44: #{delta_e_itp_loss.1} parent=42 // loop_pre_header
                  _
                $region45: #{delta_e_itp_loss.1} parent=42 // loop_header
                  %s188 = sphi 0, %s190
                  %p189 = scmp.ge.s32.totalorder %s188, %s144
                  %s193 = sphi 0, %s204
                  %s194 = sphi %s151, %s207
                  %s195 = sphi %s142, %s208
                $region46: #{delta_e_itp_loss.1} parent=42 // loop_header_branch
                  %192 = sbr.rel (%p189) target = $region50
                $region47: #{delta_e_itp_loss.1} parent=42 // loop_body
                  %v196 = vld [vmem:[%s194] sm:%s186]
                  %197 = vst [vmem:[%s195] sm:%s186] %v196
                  %v198 = vld [vmem:[%s194 + $0x2] sm:%s186]
                  %199 = vst [vmem:[%s195 + $0x8] sm:%s186] %v198
                  %v200 = vld [vmem:[%s194 + $0x4] sm:%s186]
                  %201 = vst [vmem:[%s195 + $0x10] sm:%s186] %v200
                  %s202 = sadd.s32 1, %s193
                  %p203 = scmp.ge.s32.totalorder %s202, %s144
                  %s204 = scalar_select %p203, 0, %s202
                  %s205 = smul.u32 %s204, 2
                  %s206 = smul.u32 %s204, 2
                  %s207 = scalar_lea.vmem %s151, %s205
                  %s208 = scalar_lea.vmem %s142, %s206 [#allocation2]
                $region48: #{delta_e_itp_loss.1} parent=42 // loop_footer
                  %s190 = sadd.s32 %s188, 1
                $region49: #{delta_e_itp_loss.1} parent=42 // loop_footer_branch
                  %187 = sbr.rel target = $region45
                $region50: #{delta_e_itp_loss.1} parent=42 // loop_exit
                  _
              $region43: #{delta_e_itp_loss.1} parent=27 // pred_fallthru
                _
            $region28: #{delta_e_itp_loss.1} parent=23 // pred_fallthru
              _
            // Predicated region
            $region29: #{delta_e_itp_loss.1} parent=23 // pred_check
              _
            $region30: #{delta_e_itp_loss.1} parent=23 // pred_check_branch
              %158 = sbr.rel (0) target = $region32
            $region31: #{delta_e_itp_loss.1} parent=23 // pred_region
              %s160 = ssub.s32 4, 1
              // While loop
              $region33: #{delta_e_itp_loss.1} parent=31 // loop_pre_header
                _
              $region34: #{delta_e_itp_loss.1} parent=31 // loop_header
                %s162 = sphi 0, %s164
                %p163 = scmp.ge.s32.totalorder %s162, %s144
                %s167 = sphi 0, %s178
                %s168 = sphi %s151, %s181
                %s169 = sphi %s142, %s182
              $region35: #{delta_e_itp_loss.1} parent=31 // loop_header_branch
                %166 = sbr.rel (%p163) target = $region39
              $region36: #{delta_e_itp_loss.1} parent=31 // loop_body
                %v170 = vld [vmem:[%s168] sm:%s160]
                %171 = vst [vmem:[%s169] sm:%s160] %v170
                %v172 = vld [vmem:[%s168 + $0x2] sm:%s160]
                %173 = vst [vmem:[%s169 + $0x8] sm:%s160] %v172
                %v174 = vld [vmem:[%s168 + $0x4] sm:%s160]
                %175 = vst [vmem:[%s169 + $0x10] sm:%s160] %v174
                %s176 = sadd.s32 1, %s167
                %p177 = scmp.ge.s32.totalorder %s176, %s144
                %s178 = scalar_select %p177, 0, %s176
                %s179 = smul.u32 %s178, 2
                %s180 = smul.u32 %s178, 2
                %s181 = scalar_lea.vmem %s151, %s179
                %s182 = scalar_lea.vmem %s142, %s180 [#allocation2]
              $region37: #{delta_e_itp_loss.1} parent=31 // loop_footer
                %s164 = sadd.s32 %s162, 1
              $region38: #{delta_e_itp_loss.1} parent=31 // loop_footer_branch
                %161 = sbr.rel target = $region34
              $region39: #{delta_e_itp_loss.1} parent=31 // loop_exit
                _
            $region32: #{delta_e_itp_loss.1} parent=23 // pred_fallthru
              _
          $region24: #{delta_e_itp_loss.1} parent=19 // pred_fallthru
            _
          %209 = vnop
        $region20: #{delta_e_itp_loss.1} parent=15 // pred_fallthru
          _
        // Predicated region
        $region51: #{delta_e_itp_loss.1} parent=15 // pred_check
          %p210 = pneg %p81
        $region52: #{delta_e_itp_loss.1} parent=15 // pred_check_branch
          %212 = sbr.rel (%p210) target = $region54
        $region53: #{delta_e_itp_loss.1} parent=15 // pred_region
          %s213 = sand.u32 %s71, 1
          %s214 = sand.u32 %s71, 1
          %s215 = smul.addr %s214, 24
          %s216 = scalar_lea.vmem [#allocation3], %s215
          %s217 = smul.u32 4, %s16
          %s218 = ssub.s32 1, %s217
          %s219 = smul.u32 6, %s218
          %p220 = scmp.ne.s32.totalorder 0, %s219
          %s221 = sadd.s32 %s17, %s217
          %s222 = smul.addr %s15, 3
          %s223 = sadd.s32 %s221, %s222
          %s224 = smul.addr %s223, 2
          %s225 = scalar_lea.vmem %s1, %s224
          // Predicated region
          $region55: #{delta_e_itp_loss.1} parent=53 // pred_check
            %p226 = pneg %p220
          $region56: #{delta_e_itp_loss.1} parent=53 // pred_check_branch
            %228 = sbr.rel (%p226) target = $region58
          $region57: #{delta_e_itp_loss.1} parent=53 // pred_region
            // Predicated region
            $region59: #{delta_e_itp_loss.1} parent=57 // pred_check
              _
            $region60: #{delta_e_itp_loss.1} parent=57 // pred_check_branch
              %230 = sbr.rel target = $region62
            $region61: #{delta_e_itp_loss.1} parent=57 // pred_region
              // Predicated region
              $region74: #{delta_e_itp_loss.1} parent=61 // pred_check
                _
              $region75: #{delta_e_itp_loss.1} parent=61 // pred_check_branch
                %258 = sbr.rel (0) target = $region77
              $region76: #{delta_e_itp_loss.1} parent=61 // pred_region
                %s260 = ssub.s32 4, 1
                // While loop
                $region78: #{delta_e_itp_loss.1} parent=76 // loop_pre_header
                  _
                $region79: #{delta_e_itp_loss.1} parent=76 // loop_header
                  %s262 = sphi 0, %s264
                  %p263 = scmp.ge.s32.totalorder %s262, %s218
                  %s267 = sphi 0, %s278
                  %s268 = sphi %s225, %s281
                  %s269 = sphi %s216, %s282
                $region80: #{delta_e_itp_loss.1} parent=76 // loop_header_branch
                  %266 = sbr.rel (%p263) target = $region84
                $region81: #{delta_e_itp_loss.1} parent=76 // loop_body
                  %v270 = vld [vmem:[%s268] sm:%s260]
                  %271 = vst [vmem:[%s269] sm:%s260] %v270
                  %v272 = vld [vmem:[%s268 + $0x2] sm:%s260]
                  %273 = vst [vmem:[%s269 + $0x8] sm:%s260] %v272
                  %v274 = vld [vmem:[%s268 + $0x4] sm:%s260]
                  %275 = vst [vmem:[%s269 + $0x10] sm:%s260] %v274
                  %s276 = sadd.s32 1, %s267
                  %p277 = scmp.ge.s32.totalorder %s276, %s218
                  %s278 = scalar_select %p277, 0, %s276
                  %s279 = smul.u32 %s278, 2
                  %s280 = smul.u32 %s278, 2
                  %s281 = scalar_lea.vmem %s225, %s279
                  %s282 = scalar_lea.vmem %s216, %s280 [#allocation3]
                $region82: #{delta_e_itp_loss.1} parent=76 // loop_footer
                  %s264 = sadd.s32 %s262, 1
                $region83: #{delta_e_itp_loss.1} parent=76 // loop_footer_branch
                  %261 = sbr.rel target = $region79
                $region84: #{delta_e_itp_loss.1} parent=76 // loop_exit
                  _
              $region77: #{delta_e_itp_loss.1} parent=61 // pred_fallthru
                _
            $region62: #{delta_e_itp_loss.1} parent=57 // pred_fallthru
              _
            // Predicated region
            $region63: #{delta_e_itp_loss.1} parent=57 // pred_check
              _
            $region64: #{delta_e_itp_loss.1} parent=57 // pred_check_branch
              %232 = sbr.rel (0) target = $region66
            $region65: #{delta_e_itp_loss.1} parent=57 // pred_region
              %s234 = ssub.s32 4, 1
              // While loop
              $region67: #{delta_e_itp_loss.1} parent=65 // loop_pre_header
                _
              $region68: #{delta_e_itp_loss.1} parent=65 // loop_header
                %s236 = sphi 0, %s238
                %p237 = scmp.ge.s32.totalorder %s236, %s218
                %s241 = sphi 0, %s252
                %s242 = sphi %s225, %s255
                %s243 = sphi %s216, %s256
              $region69: #{delta_e_itp_loss.1} parent=65 // loop_header_branch
                %240 = sbr.rel (%p237) target = $region73
              $region70: #{delta_e_itp_loss.1} parent=65 // loop_body
                %v244 = vld [vmem:[%s242] sm:%s234]
                %245 = vst [vmem:[%s243] sm:%s234] %v244
                %v246 = vld [vmem:[%s242 + $0x2] sm:%s234]
                %247 = vst [vmem:[%s243 + $0x8] sm:%s234] %v246
                %v248 = vld [vmem:[%s242 + $0x4] sm:%s234]
                %249 = vst [vmem:[%s243 + $0x10] sm:%s234] %v248
                %s250 = sadd.s32 1, %s241
                %p251 = scmp.ge.s32.totalorder %s250, %s218
                %s252 = scalar_select %p251, 0, %s250
                %s253 = smul.u32 %s252, 2
                %s254 = smul.u32 %s252, 2
                %s255 = scalar_lea.vmem %s225, %s253
                %s256 = scalar_lea.vmem %s216, %s254 [#allocation3]
              $region71: #{delta_e_itp_loss.1} parent=65 // loop_footer
                %s238 = sadd.s32 %s236, 1
              $region72: #{delta_e_itp_loss.1} parent=65 // loop_footer_branch
                %235 = sbr.rel target = $region68
              $region73: #{delta_e_itp_loss.1} parent=65 // loop_exit
                _
            $region66: #{delta_e_itp_loss.1} parent=57 // pred_fallthru
              _
          $region58: #{delta_e_itp_loss.1} parent=53 // pred_fallthru
            _
          %283 = vnop
        $region54: #{delta_e_itp_loss.1} parent=15 // pred_fallthru
          _
      $region16: #{delta_e_itp_loss.1} parent=5 // pred_fallthru
        _
      %p284 = scmp.le.s32.totalorder 1, %s8
      %p285 = scmp.lt.s32.totalorder %s8, 3
      %p286 = pnand %p284, %p285
      %p287 = pneg %p286
      // Predicated region
      $region85: #{delta_e_itp_loss.1} parent=5 // pred_check
        _
      $region86: #{delta_e_itp_loss.1} parent=5 // pred_check_branch
        %289 = sbr.rel (%p286) target = $region88
      $region87: #{delta_e_itp_loss.1} parent=5 // pred_region
        %s290 = ssub.s32 %s8, 1
        %s291 = sand.u32 %s44, 1
        %s292 = sand.u32 %s44, 1
        %s293 = smul.addr %s292, 24
        %s294 = scalar_lea.vmem [#allocation2], %s293
        // Predicated region
        $region89: #{delta_e_itp_loss.1} parent=87 // pred_check
          %p295 = pneg %p57
        $region90: #{delta_e_itp_loss.1} parent=87 // pred_check_branch
          %297 = sbr.rel (%p295) target = $region92
        $region91: #{delta_e_itp_loss.1} parent=87 // pred_region
          _
        $region92: #{delta_e_itp_loss.1} parent=87 // pred_fallthru
          _
        %s298 = sand.u32 %s74, 1
        %s299 = sand.u32 %s74, 1
        %s300 = smul.addr %s299, 24
        %s301 = scalar_lea.vmem [#allocation3], %s300
        // Predicated region
        $region93: #{delta_e_itp_loss.1} parent=87 // pred_check
          %p302 = pneg %p87
        $region94: #{delta_e_itp_loss.1} parent=87 // pred_check_branch
          %304 = sbr.rel (%p302) target = $region96
        $region95: #{delta_e_itp_loss.1} parent=87 // pred_region
          _
        $region96: #{delta_e_itp_loss.1} parent=87 // pred_fallthru
          _
        %s305 = sand.u32 %s44, 1
        %s306 = sand.u32 %s44, 1
        %s307 = smul.addr %s306, 24
        %s308 = scalar_lea.vmem [#allocation2], %s307
        %p309 = pneg %p57
        %p310 = pneg %p54
        %s311 = sand.u32 %s74, 1
        %s312 = sand.u32 %s74, 1
        %s313 = smul.addr %s312, 24
        %s314 = scalar_lea.vmem [#allocation3], %s313
        %p315 = pneg %p87
        %p316 = pneg %p84
        %p317 = pneg %p117
        %p318 = pneg %p114
        %s319 = sadd.s32 %s18, %s19
        %s320 = sadd.s32 %s319, %s20
        %p321 = scmp.lt.s32.totalorder %s320, 1
        %s322 = scalar_select %p321, %s320, 1
        %s323 = smul.addr %s322, 8
        %s324 = scalar_lea.vmem %s2, %s323
        %s325 = smul.u32 4, %s19
        %s326 = ssub.s32 1, %s325
        %s327 = smul.u32 6, %s326
        %s328 = smul.u32 4, %s19
        %s329 = ssub.s32 1, %s328
        %s330 = smul.u32 6, %s329
        %s331 = sadd.s32 %s18, %s19
        %s332 = sadd.s32 %s331, %s20
        %p333 = scmp.lt.s32.totalorder %s332, 1
        %s334 = scalar_select %p333, %s332, 1
        %s335 = smul.addr %s334, 8
        %s336 = scalar_lea.vmem %s2, %s335
        %s337 = sadd.s32 %s18, %s19
        %s338 = sadd.s32 %s337, %s20
        %v339 = vld [vmem:[%s294] sm:$0xff]
        %s340 = scalar_lea.vmem %s294, 8 [#allocation2]
        %v341 = vld [vmem:[%s340] sm:$0xff]
        %s342 = scalar_lea.vmem %s294, 16 [#allocation2]
        %v343 = vld [vmem:[%s342] sm:$0xff]
        %v344 = vmul.f32 %v339, 1688.0
        %v345 = vmul.f32 %v341, 2146.0
        %v346 = vadd.f32 %v344, %v345
        %v347 = vmul.f32 %v343, 262.0
        %v348 = vadd.f32 %v346, %v347
        %v349 = vmul.f32 %v348, 0.00024414063
        %v350 = vmul.f32 %v339, 683.0
        %v351 = vmul.f32 %v341, 2951.0
        %v352 = vadd.f32 %v350, %v351
        %v353 = vmul.f32 %v343, 462.0
        %v354 = vadd.f32 %v352, %v353
        %v355 = vmul.f32 %v354, 0.00024414063
        %v356 = vmul.f32 %v339, 99.0
        %v357 = vmul.f32 %v341, 309.0
        %v358 = vadd.f32 %v356, %v357
        %v359 = vmul.f32 %v343, 3688.0
        %v360 = vadd.f32 %v358, %v359
        %v361 = vmul.f32 %v360, 0.00024414063
        %v362 = vmax.f32 %v349, 0.0
        %v363 = vmin.f32 %v362, 1.0
        %v364 = vlog2.pop %v363
        %v365 = vmul.f32 %v364, 0.6931472
        %v366 = vmul.f32 %v365, 0.15930176
        %v367 = vmul.f32 %v366, 1.442695
        %v368 = vpow.pop %v367
        %v369 = vmul.f32 %v368, 18.851563
        %v370 = vadd.f32 %v369, 0.8359375
        %v371 = vlog2.pop %v370
        %v372 = vmul.f32 %v371, 0.6931472
        %v373 = vmul.f32 %v368, 18.6875
        %v374 = vadd.f32 %v373, 1.0
        %v375 = vlog2.pop %v374
        %v376 = vmul.f32 %v375, 0.6931472
        %v377 = vsub.f32 %v372, %v376
        %v378 = vmul.f32 %v377, 78.84375
        %v379 = vmul.f32 %v378, 1.442695
        %v380 = vpow.pop %v379
        %v381 = vmax.f32 %v355, 0.0
        %v382 = vmin.f32 %v381, 1.0
        %v383 = vlog2.pop %v382
        %v384 = vmul.f32 %v383, 0.6931472
        %v385 = vmul.f32 %v384, 0.15930176
        %v386 = vmul.f32 %v385, 1.442695
        %v387 = vpow.pop %v386
        %v388 = vmul.f32 %v387, 18.851563
        %v389 = vadd.f32 %v388, 0.8359375
        %v390 = vlog2.pop %v389
        %v391 = vmul.f32 %v390, 0.6931472
        %v392 = vmul.f32 %v387, 18.6875
        %v393 = vadd.f32 %v392, 1.0
        %v394 = vlog2.pop %v393
        %v395 = vmul.f32 %v394, 0.6931472
        %v396 = vsub.f32 %v391, %v395
        %v397 = vmul.f32 %v396, 78.84375
        %v398 = vmul.f32 %v397, 1.442695
        %v399 = vpow.pop %v398
        %v400 = vmax.f32 %v361, 0.0
        %v401 = vmin.f32 %v400, 1.0
        %v402 = vlog2.pop %v401
        %v403 = vmul.f32 %v402, 0.6931472
        %v404 = vmul.f32 %v403, 0.15930176
        %v405 = vmul.f32 %v404, 1.442695
        %v406 = vpow.pop %v405
        %v407 = vmul.f32 %v406, 18.851563
        %v408 = vadd.f32 %v407, 0.8359375
        %v409 = vlog2.pop %v408
        %v410 = vmul.f32 %v409, 0.6931472
        %v411 = vmul.f32 %v406, 18.6875
        %v412 = vadd.f32 %v411, 1.0
        %v413 = vlog2.pop %v412
        %v414 = vmul.f32 %v413, 0.6931472
        %v415 = vsub.f32 %v410, %v414
        %v416 = vmul.f32 %v415, 78.84375
        %v417 = vmul.f32 %v416, 1.442695
        %v418 = vpow.pop %v417
        %v419 = vmul.f32 %v380, 0.5
        %v420 = vmul.f32 %v399, 0.5
        %v421 = vadd.f32 %v419, %v420
        %v422 = vmul.f32 %v380, 6610.0
        %v423 = vmul.f32 %v399, 13613.0
        %v424 = vsub.f32 %v422, %v423
        %v425 = vmul.f32 %v418, 7003.0
        %v426 = vadd.f32 %v424, %v425
        %v427 = vmul.f32 %v426, 0.00024414063
        %v428 = vmul.f32 %v380, 17933.0
        %v429 = vmul.f32 %v399, 17390.0
        %v430 = vsub.f32 %v428, %v429
        %v431 = vmul.f32 %v418, 543.0
        %v432 = vsub.f32 %v430, %v431
        %v433 = vmul.f32 %v432, 0.00024414063
        %v434 = vmul.f32 %v427, 0.5
        %v435 = vld [vmem:[%s301] sm:$0xff]
        %s436 = scalar_lea.vmem %s301, 8 [#allocation3]
        %v437 = vld [vmem:[%s436] sm:$0xff]
        %s438 = scalar_lea.vmem %s301, 16 [#allocation3]
        %v439 = vld [vmem:[%s438] sm:$0xff]
        %v440 = vmul.f32 %v435, 1688.0
        %v441 = vmul.f32 %v437, 2146.0
        %v442 = vadd.f32 %v440, %v441
        %v443 = vmul.f32 %v439, 262.0
        %v444 = vadd.f32 %v442, %v443
        %v445 = vmul.f32 %v444, 0.00024414063
        %v446 = vmul.f32 %v435, 683.0
        %v447 = vmul.f32 %v437, 2951.0
        %v448 = vadd.f32 %v446, %v447
        %v449 = vmul.f32 %v439, 462.0
        %v450 = vadd.f32 %v448, %v449
        %v451 = vmul.f32 %v450, 0.00024414063
        %v452 = vmul.f32 %v435, 99.0
        %v453 = vmul.f32 %v437, 309.0
        %v454 = vadd.f32 %v452, %v453
        %v455 = vmul.f32 %v439, 3688.0
        %v456 = vadd.f32 %v454, %v455
        %v457 = vmul.f32 %v456, 0.00024414063
        %v458 = vmax.f32 %v445, 0.0
        %v459 = vmin.f32 %v458, 1.0
        %v460 = vlog2.pop %v459
        %v461 = vmul.f32 %v460, 0.6931472
        %v462 = vmul.f32 %v461, 0.15930176
        %v463 = vmul.f32 %v462, 1.442695
        %v464 = vpow.pop %v463
        %v465 = vmul.f32 %v464, 18.851563
        %v466 = vadd.f32 %v465, 0.8359375
        %v467 = vlog2.pop %v466
        %v468 = vmul.f32 %v467, 0.6931472
        %v469 = vmul.f32 %v464, 18.6875
        %v470 = vadd.f32 %v469, 1.0
        %v471 = vlog2.pop %v470
        %v472 = vmul.f32 %v471, 0.6931472
        %v473 = vsub.f32 %v468, %v472
        %v474 = vmul.f32 %v473, 78.84375
        %v475 = vmul.f32 %v474, 1.442695
        %v476 = vpow.pop %v475
        %v477 = vmax.f32 %v451, 0.0
        %v478 = vmin.f32 %v477, 1.0
        %v479 = vlog2.pop %v478
        %v480 = vmul.f32 %v479, 0.6931472
        %v481 = vmul.f32 %v480, 0.15930176
        %v482 = vmul.f32 %v481, 1.442695
        %v483 = vpow.pop %v482
        %v484 = vmul.f32 %v483, 18.851563
        %v485 = vadd.f32 %v484, 0.8359375
        %v486 = vlog2.pop %v485
        %v487 = vmul.f32 %v486, 0.6931472
        %v488 = vmul.f32 %v483, 18.6875
        %v489 = vadd.f32 %v488, 1.0
        %v490 = vlog2.pop %v489
        %v491 = vmul.f32 %v490, 0.6931472
        %v492 = vsub.f32 %v487, %v491
        %v493 = vmul.f32 %v492, 78.84375
        %v494 = vmul.f32 %v493, 1.442695
        %v495 = vpow.pop %v494
        %v496 = vmax.f32 %v457, 0.0
        %v497 = vmin.f32 %v496, 1.0
        %v498 = vlog2.pop %v497
        %v499 = vmul.f32 %v498, 0.6931472
        %v500 = vmul.f32 %v499, 0.15930176
        %v501 = vmul.f32 %v500, 1.442695
        %v502 = vpow.pop %v501
        %v503 = vmul.f32 %v502, 18.851563
        %v504 = vadd.f32 %v503, 0.8359375
        %v505 = vlog2.pop %v504
        %v506 = vmul.f32 %v505, 0.6931472
        %v507 = vmul.f32 %v502, 18.6875
        %v508 = vadd.f32 %v507, 1.0
        %v509 = vlog2.pop %v508
        %v510 = vmul.f32 %v509, 0.6931472
        %v511 = vsub.f32 %v506, %v510
        %v512 = vmul.f32 %v511, 78.84375
        %v513 = vmul.f32 %v512, 1.442695
        %v514 = vpow.pop %v513
        %v515 = vmul.f32 %v476, 0.5
        %v516 = vmul.f32 %v495, 0.5
        %v517 = vadd.f32 %v515, %v516
        %v518 = vmul.f32 %v476, 6610.0
        %v519 = vmul.f32 %v495, 13613.0
        %v520 = vsub.f32 %v518, %v519
        %v521 = vmul.f32 %v514, 7003.0
        %v522 = vadd.f32 %v520, %v521
        %v523 = vmul.f32 %v522, 0.00024414063
        %v524 = vmul.f32 %v476, 17933.0
        %v525 = vmul.f32 %v495, 17390.0
        %v526 = vsub.f32 %v524, %v525
        %v527 = vmul.f32 %v514, 543.0
        %v528 = vsub.f32 %v526, %v527
        %v529 = vmul.f32 %v528, 0.00024414063
        %v530 = vmul.f32 %v523, 0.5
        %v531 = vsub.f32 %v421, %v517
        %v532 = vmul.f32 %v531, %v531
        %v533 = vsub.f32 %v434, %v530
        %v534 = vmul.f32 %v533, %v533
        %v535 = vadd.f32 %v532, %v534
        %v536 = vsub.f32 %v433, %v529
        %v537 = vmul.f32 %v536, %v536
        %v538 = vadd.f32 %v535, %v537
        %v539 = vadd.f32 %v538, 1e-08
        %v540 = vrsqrt.pop %v539
        %v541 = vmul.f32 %v540, %v539
        %v542 = vmul.f32 %v541, %v540
        %v543 = vmul.f32 0.5, %v542
        %v544 = vsub.f32 1.5, %v543
        %v545 = vmul.f32 %v540, %v544
        %v546 = vmul.f32 %v539, %v545
        %vm547 = vcmp.eq.f32.partialorder %v539, inf
        %v548 = vsel %vm547, %v539, %v546
        %vm549 = vcmp.eq.f32.partialorder %v539, 0.0
        %v550 = vand.u32 %v539, 2147483648
        %v551 = vsel %vm549, %v550, %v548
        %v552 = vlaneseq
        %v553 = vshrl.u32 %v552, 7
        %s554 = smul.u32 %s19, 8
        %v555 = vstv %s554
        %v556 = vadd.s32 %v553, %v555
        %v557 = vlaneseq
        %v558 = vand.u32 %v557, 127
        %s559 = smul.u32 %s20, 128
        %v560 = vstv %s559
        %v561 = vadd.s32 %v558, %v560
        %vm562 = vcmp.lt.s32.totalorder %v556, 2
        %vm563 = vcmp.lt.s32.totalorder %v561, 128
        %vm564 = vmand %vm562, %vm563
        %v565 = vsel %vm564, %v551, 0.0
        %v566 = vadd.f32 %v565, 0.0
        %567 = vst [vmem:[%s336] sm:$0xff] %v566
        %s568 = sadd.s32 %s18, %s19
        %s569 = sadd.s32 %s568, %s20
        %p570 = scmp.lt.s32.totalorder %s569, 1
        %s571 = scalar_select %p570, %s569, 1
        %s572 = smul.addr %s571, 8
        %s573 = scalar_lea.vmem %s2, %s572
        // Predicated region
        $region97: #{delta_e_itp_loss.1} parent=87 // pred_check
          %p574 = pneg %p114
        $region98: #{delta_e_itp_loss.1} parent=87 // pred_check_branch
          %576 = sbr.rel (%p574) target = $region100
        $region99: #{delta_e_itp_loss.1} parent=87 // pred_region
          %s577 = sadd.s32 %s18, %s19
          %s578 = sadd.s32 %s577, %s20
        $region100: #{delta_e_itp_loss.1} parent=87 // pred_fallthru
          _
      $region88: #{delta_e_itp_loss.1} parent=5 // pred_fallthru
        _
      %p579 = scmp.le.s32.totalorder 2, %s8
      // Predicated region
      $region101: #{delta_e_itp_loss.1} parent=5 // pred_check
        %p580 = pneg %p579
      $region102: #{delta_e_itp_loss.1} parent=5 // pred_check_branch
        %582 = sbr.rel (%p580) target = $region104
      $region103: #{delta_e_itp_loss.1} parent=5 // pred_region
        %s583 = ssub.s32 %s8, 2
        // Predicated region
        $region105: #{delta_e_itp_loss.1} parent=103 // pred_check
          %p584 = pneg %p120
        $region106: #{delta_e_itp_loss.1} parent=103 // pred_check_branch
          %586 = sbr.rel (%p584) target = $region108
        $region107: #{delta_e_itp_loss.1} parent=103 // pred_region
          %s587 = sadd.s32 %s21, %s22
          %s588 = sadd.s32 %s587, %s23
          %p589 = scmp.lt.s32.totalorder %s588, 1
          %s590 = scalar_select %p589, %s588, 1
          %s591 = smul.addr %s590, 8
          %s592 = scalar_lea.vmem %s2, %s591
        $region108: #{delta_e_itp_loss.1} parent=103 // pred_fallthru
          _
      $region104: #{delta_e_itp_loss.1} parent=5 // pred_fallthru
        _
    $region6: #{delta_e_itp_loss.1} parent=1 // loop_footer
      %s12 = sadd.s32 1, %s8
    $region7: #{delta_e_itp_loss.1} parent=1 // loop_footer_branch
      %7 = sbr.rel target = $region3
    $region8: #{delta_e_itp_loss.1} parent=1 // loop_exit
      _

</llo_original>
